<compile_context>
chip_gen: v6e
topology: v6e:2x2x1
jax: 0.10.0
libtpu: 0.0.40
codegen_flags: <defaults>
</compile_context>

<pallas_src>
import math

import jax
import jax.numpy as jnp
from jax.experimental import pallas as pl
from jax.experimental.pallas import tpu as pltpu

_LANE = 128
_SUBLANE = 8
_ROW_ALIGN = 16  # bf16 packs two rows per sublane -> keep row tiles 16-aligned
_INV_SQRT2 = 1.0 / math.sqrt(2.0)


def _round_up(x, m):
    return ((x + m - 1) // m) * m


def mlp_kernel(x_ref, w0_ref, b0_ref, w1_ref, b1_ref, o_ref, acc_ref):
    # x_ref : (tile_n, in_p)     f32 or bf16
    # w0_ref: (in_p, tile_mid)   bf16      b0_ref: (1, tile_mid) f32
    # w1_ref: (tile_mid, out_p)  bf16      b1_ref: (1, out_p)    f32
    # o_ref : (tile_n, out_p)    out dtype acc_ref: (tile_n, out_p) f32
    k = pl.program_id(1)

    @pl.when(k == 0)
    def _init():
        acc_ref[...] = jnp.zeros_like(acc_ref)

    x = x_ref[...].astype(jnp.bfloat16)
    h = jnp.dot(x, w0_ref[...], preferred_element_type=jnp.float32)
    h = h + b0_ref[...]
    # Exact (erf-based) GELU in f32, matching nn.GELU() default semantics.
    # GELU is elementwise over the hidden dim, so per-mid-tile application is
    # exact; zero-padded hidden columns give GELU(0) = 0 and contribute 0.
    h = 0.5 * h * (1.0 + jax.lax.erf(h * _INV_SQRT2))
    acc_ref[...] += jnp.dot(h.astype(jnp.bfloat16), w1_ref[...],
                            preferred_element_type=jnp.float32)

    @pl.when(k == pl.num_programs(1) - 1)
    def _finalize():
        o_ref[...] = (acc_ref[...] + b1_ref[...]).astype(o_ref.dtype)


def prepare_params(w0, b0, w1, b1, *, compute_dtype=jnp.bfloat16):
    """One-time packing of PyTorch-layout params into kernel layout.

    w0: (mid, in), b0: (mid,), w1: (out, mid), b1: (out,)
    -> padded, pre-transposed (in_p, mid_p)/(mid_p, out_p) bf16 weights and
       (1, mid_p)/(1, out_p) f32 biases. Zero padding keeps results exact.
    """
    mid, in_f = w0.shape
    out_f = w1.shape[0]
    in_p = _round_up(in_f, _LANE)
    mid_p = _round_up(mid, _LANE)
    out_p = _round_up(out_f, _LANE)

    w0t = jnp.zeros((in_p, mid_p), compute_dtype)
    w0t = w0t.at[:in_f, :mid].set(jnp.asarray(w0).T.astype(compute_dtype))
    w1t = jnp.zeros((mid_p, out_p), compute_dtype)
    w1t = w1t.at[:mid, :out_f].set(jnp.asarray(w1).T.astype(compute_dtype))
    b0r = jnp.zeros((1, mid_p), jnp.float32)
    b0r = b0r.at[0, :mid].set(jnp.asarray(b0, jnp.float32))
    b1r = jnp.zeros((1, out_p), jnp.float32)
    b1r = b1r.at[0, :out_f].set(jnp.asarray(b1, jnp.float32))
    return (w0t, b0r, w1t, b1r), (in_f, mid, out_f)


def _vmem_cap_bytes():
    """Per-generation VMEM budget ceiling (per-TensorCore)."""
    try:
        kind = jax.devices()[0].device_kind.lower()
    except Exception:  # pragma: no cover - defensive
        kind = ""
    if "v5" in kind or "v6" in kind:
        return 100 << 20          # 128 MiB physical; leave compiler headroom
    return 52 << 20               # v7x (or unknown): 64 MiB physical per TC


def _vmem_limit_bytes(tile_n, in_p, tile_mid, out_p, x_itemsize, out_itemsize):
    dbl = 2  # default pipeline double-buffering
    x_b = tile_n * in_p * x_itemsize * dbl
    w0_b = in_p * tile_mid * 2 * dbl                 # bf16 weight tiles
    w1_b = tile_mid * out_p * 2 * dbl
    b_b = _SUBLANE * (tile_mid + out_p) * 4 * dbl    # f32 biases (sublane pad)
    o_b = tile_n * out_p * out_itemsize * dbl
    acc_b = tile_n * out_p * 4                       # accumulator scratch
    h_b = tile_n * tile_mid * (4 + 2)                # f32 h + bf16 cast copy
    total = int((x_b + w0_b + w1_b + b_b + o_b + acc_b + h_b) * 1.5) + (4 << 20)
    return max(32 << 20, min(total, _vmem_cap_bytes()))


def _pick_tile_mid(mid_p, want):
    """Largest multiple of 128 that divides mid_p and is <= want."""
    want = max(_LANE, (int(want) // _LANE) * _LANE)
    want = min(want, mid_p)
    best = _LANE
    t = _LANE
    while t <= want:
        if mid_p % t == 0:
            best = t
        t += _LANE
    return best


def mlp_forward(x, params, dims, *, tile_n=256, tile_mid=512,
                out_dtype=jnp.float32):
    """x: (N, in_f). params/dims from prepare_params(). Returns (N, out_f)."""
    in_f, mid, out_f = dims
    w0t, b0r, w1t, b1r = params
    in_p, mid_p = w0t.shape
    out_p = w1t.shape[1]
    n = x.shape[0]

    # Row tile: 16-aligned (bf16 packs 2 rows/sublane), no larger than needed.
    tile_n = max(_ROW_ALIGN, (int(tile_n) // _ROW_ALIGN) * _ROW_ALIGN)
    tile_n = min(tile_n, _round_up(n, _ROW_ALIGN))
    n_pad = _round_up(n, tile_n)
    tile_mid = _pick_tile_mid(mid_p, tile_mid)

    # Avoid the host-side pad/cast copy when x is already aligned; the kernel
    # casts to bf16 on the VPU.  Otherwise pad once, as bf16 (halves the
    # kernel-side activation read vs. a padded f32 copy).
    if n_pad == n and in_p == in_f:
        xp = jnp.asarray(x)
    else:
        xp = jnp.zeros((n_pad, in_p), jnp.bfloat16)
        xp = xp.at[:n, :in_f].set(jnp.asarray(x).astype(jnp.bfloat16))
    x_itemsize = jnp.dtype(xp.dtype).itemsize
    out_itemsize = jnp.dtype(out_dtype).itemsize

    grid = (n_pad // tile_n, mid_p // tile_mid)

    flops = 2 * n_pad * (in_p * mid_p + mid_p * out_p)
    bytes_accessed = (n_pad * in_p * x_itemsize
                      + (in_p * mid_p + mid_p * out_p) * 2
                      + (mid_p + out_p) * 4
                      + n_pad * out_p * out_itemsize)

    out_padded = pl.pallas_call(
        mlp_kernel,
        out_shape=jax.ShapeDtypeStruct((n_pad, out_p), out_dtype),
        grid_spec=pltpu.PrefetchScalarGridSpec(
            num_scalar_prefetch=0,
            grid=grid,
            in_specs=[
                # x tile: constant across the mid axis (stays resident per row).
                pl.BlockSpec((tile_n, in_p), lambda i, k: (i, 0)),
                # Weight / bias tiles streamed along the mid (reduction) axis.
                pl.BlockSpec((in_p, tile_mid), lambda i, k: (0, k)),
                pl.BlockSpec((1, tile_mid), lambda i, k: (0, k)),
                pl.BlockSpec((tile_mid, out_p), lambda i, k: (k, 0)),
                pl.BlockSpec((1, out_p), lambda i, k: (0, 0)),
            ],
            out_specs=pl.BlockSpec((tile_n, out_p), lambda i, k: (i, 0)),
            scratch_shapes=[pltpu.VMEM((tile_n, out_p), jnp.float32)],
        ),
        compiler_params=pltpu.CompilerParams(
            dimension_semantics=("parallel", "arbitrary"),
            vmem_limit_bytes=_vmem_limit_bytes(
                tile_n, in_p, tile_mid, out_p, x_itemsize, out_itemsize),
        ),
        cost_estimate=pl.CostEstimate(
            flops=flops,
            transcendentals=n_pad * mid_p,
            bytes_accessed=bytes_accessed,
        ),
    )(xp, w0t, b0r, w1t, b1r)

    return out_padded[:n, :out_f]


def _reference(x, w0, b0, w1, b1):
    # Mirrors kernel numerics: bf16 MXU operands, f32 accumulation/epilogue.
    f32 = jnp.float32
    xb = x.astype(jnp.bfloat16).astype(f32)
    w0b = jnp.asarray(w0).astype(jnp.bfloat16).astype(f32)
    w1b = jnp.asarray(w1).astype(jnp.bfloat16).astype(f32)
    h = xb @ w0b.T + b0
    h = 0.5 * h * (1.0 + jax.lax.erf(h / jnp.sqrt(2.0)))
    hb = h.astype(jnp.bfloat16).astype(f32)
    return hb @ w1b.T + b1


if __name__ == "__main__":
    # Small shapes consistent with the module's forward:
    # rows (batch*seq) = 200 (exercises row padding + a 2-step row grid),
    # in_features = 32, mid_features = 192 (exercises mid padding + a 2-step
    # reduction grid with the accumulator), out_features = 32.
    N, IN_F, MID_F, OUT_F = 200, 32, 192, 32

    key = jax.random.PRNGKey(0)
    kx, k0w, k0b, k1w, k1b = jax.random.split(key, 5)

    x = jax.random.normal(kx, (N, IN_F), dtype=jnp.float32)

    # PyTorch nn.Linear-style uniform(-1/sqrt(fan_in), 1/sqrt(fan_in)) init.
    lim0 = 1.0 / math.sqrt(IN_F)
    lim1 = 1.0 / math.sqrt(MID_F)
    w0 = jax.random.uniform(k0w, (MID_F, IN_F), jnp.float32, -lim0, lim0)
    b0 = jax.random.uniform(k0b, (MID_F,), jnp.float32, -lim0, lim0)
    w1 = jax.random.uniform(k1w, (OUT_F, MID_F), jnp.float32, -lim1, lim1)
    b1 = jax.random.uniform(k1b, (OUT_F,), jnp.float32, -lim1, lim1)

    # One-time parameter packing (transpose / pad / bf16 cast).
    params, dims = prepare_params(w0, b0, w1, b1)

    out = mlp_forward(x, params, dims, tile_n=128, tile_mid=128)
    out = jax.block_until_ready(out)

    ref = _reference(x, w0, b0, w1, b1)
    assert out.shape == (N, OUT_F)
    assert jnp.allclose(out, ref, atol=3e-3, rtol=3e-3), "mismatch vs reference"

    print("KERNEL_OK")
</pallas_src>

<mosaic_0001>
module attributes {stable_mosaic.version = 11 : i64} {
  func.func @mlp_kernel(%arg0: i32, %arg1: i32, %arg2: memref<128x128xbf16, #tpu.memory_space<vmem>>, %arg3: memref<128x128xbf16, #tpu.memory_space<vmem>>, %arg4: memref<1x128xf32, #tpu.memory_space<vmem>>, %arg5: memref<128x128xbf16, #tpu.memory_space<vmem>>, %arg6: memref<1x128xf32, #tpu.memory_space<vmem>>, %arg7: memref<128x128xf32, #tpu.memory_space<vmem>>, %arg8: memref<128x128xf32, #tpu.memory_space<vmem>>) attributes {dimension_semantics = [#tpu.dimension_semantics<parallel>, #tpu.dimension_semantics<arbitrary>], iteration_bounds = array<i64: 2, 2>, scalar_prefetch = 0 : i64, scratch_operands = 1 : i64, tpu.core_type = #tpu.core_type<tc>, window_params = [{transform_indices = @transform_0, window_bounds = array<i64: 128, 128>}, {transform_indices = @transform_1, window_bounds = array<i64: 128, 128>}, {transform_indices = @transform_2, window_bounds = array<i64: 1, 128>}, {transform_indices = @transform_3, window_bounds = array<i64: 128, 128>}, {pipeline_mode = #tpu.pipeline_mode<synchronous>, transform_indices = @transform_4, window_bounds = array<i64: 1, 128>}, {transform_indices = @transform_5, window_bounds = array<i64: 128, 128>}]} {
    %c0_i32 = arith.constant 0 : i32
    %0 = arith.cmpi eq, %arg1, %c0_i32 : i32
    %1 = arith.extui %0 : i1 to i32
    %c0_i32_0 = arith.constant 0 : i32
    %2 = arith.cmpi ne, %1, %c0_i32_0 : i32
    scf.if %2 {
      %cst_17 = arith.constant 0.000000e+00 : f32
      %26 = vector.broadcast %cst_17 : f32 to vector<128x128xf32>
      %c0_18 = arith.constant 0 : index
      %c0_19 = arith.constant 0 : index
      %27 = vector.load %arg8[%c0_18, %c0_19] : memref<128x128xf32, #tpu.memory_space<vmem>>, vector<128x128xf32>
      tpu.vector_store %arg8[%c0_18, %c0_19], %26 {strides = array<i32>} : memref<128x128xf32, #tpu.memory_space<vmem>>, vector<128x128xf32>,
    } else {
    }
    %c0 = arith.constant 0 : index
    %c0_1 = arith.constant 0 : index
    %3 = vector.load %arg2[%c0, %c0_1] : memref<128x128xbf16, #tpu.memory_space<vmem>>, vector<128x128xbf16>
    %c0_2 = arith.constant 0 : index
    %c0_3 = arith.constant 0 : index
    %4 = vector.load %arg3[%c0_2, %c0_3] : memref<128x128xbf16, #tpu.memory_space<vmem>>, vector<128x128xbf16>
    %cst = arith.constant dense<0.000000e+00> : vector<128x128xf32>
    %5 = tpu.matmul %3, %4, %cst {dimension_numbers = #tpu.dot_dimension_numbers<[1], [0], [0], [1], [0, 0, 1, 1], [], []>} : vector<128x128xbf16>, vector<128x128xbf16>, vector<128x128xf32> -> vector<128x128xf32>
    %c0_4 = arith.constant 0 : index
    %c0_5 = arith.constant 0 : index
    %6 = vector.load %arg4[%c0_4, %c0_5] : memref<1x128xf32, #tpu.memory_space<vmem>>, vector<1x128xf32>
    %7 = vector.broadcast %6 : vector<1x128xf32> to vector<128x128xf32>
    %8 = arith.addf %5, %7 : vector<128x128xf32>
    %cst_6 = arith.constant 5.000000e-01 : f32
    %9 = vector.broadcast %cst_6 : f32 to vector<128x128xf32>
    %10 = arith.mulf %9, %8 : vector<128x128xf32>
    %cst_7 = arith.constant 0.707106769 : f32
    %11 = vector.broadcast %cst_7 : f32 to vector<128x128xf32>
    %12 = arith.mulf %8, %11 : vector<128x128xf32>
    %13 = math.erf %12 : vector<128x128xf32>
    %cst_8 = arith.constant 1.000000e+00 : f32
    %14 = vector.broadcast %cst_8 : f32 to vector<128x128xf32>
    %15 = arith.addf %14, %13 : vector<128x128xf32>
    %16 = arith.mulf %10, %15 : vector<128x128xf32>
    %c0_9 = arith.constant 0 : index
    %c0_10 = arith.constant 0 : index
    %17 = vector.load %arg8[%c0_9, %c0_10] : memref<128x128xf32, #tpu.memory_space<vmem>>, vector<128x128xf32>
    %18 = arith.truncf %16 : vector<128x128xf32> to vector<128x128xbf16>
    %c0_11 = arith.constant 0 : index
    %c0_12 = arith.constant 0 : index
    %19 = vector.load %arg5[%c0_11, %c0_12] : memref<128x128xbf16, #tpu.memory_space<vmem>>, vector<128x128xbf16>
    %cst_13 = arith.constant dense<0.000000e+00> : vector<128x128xf32>
    %20 = tpu.matmul %18, %19, %cst_13 {dimension_numbers = #tpu.dot_dimension_numbers<[1], [0], [0], [1], [0, 0, 1, 1], [], []>} : vector<128x128xbf16>, vector<128x128xbf16>, vector<128x128xf32> -> vector<128x128xf32>
    %21 = arith.addf %17, %20 : vector<128x128xf32>
    %c0_14 = arith.constant 0 : index
    %c0_15 = arith.constant 0 : index
    %22 = vector.load %arg8[%c0_14, %c0_15] : memref<128x128xf32, #tpu.memory_space<vmem>>, vector<128x128xf32>
    tpu.vector_store %arg8[%c0_14, %c0_15], %21 {strides = array<i32>} : memref<128x128xf32, #tpu.memory_space<vmem>>, vector<128x128xf32>,
    %c1_i32 = arith.constant 1 : i32
    %23 = arith.cmpi eq, %arg1, %c1_i32 : i32
    %24 = arith.extui %23 : i1 to i32
    %c0_i32_16 = arith.constant 0 : i32
    %25 = arith.cmpi ne, %24, %c0_i32_16 : i32
    scf.if %25 {
      %c0_17 = arith.constant 0 : index
      %c0_18 = arith.constant 0 : index
      %26 = vector.load %arg8[%c0_17, %c0_18] : memref<128x128xf32, #tpu.memory_space<vmem>>, vector<128x128xf32>
      %c0_19 = arith.constant 0 : index
      %c0_20 = arith.constant 0 : index
      %27 = vector.load %arg6[%c0_19, %c0_20] : memref<1x128xf32, #tpu.memory_space<vmem>>, vector<1x128xf32>
      %28 = vector.broadcast %27 : vector<1x128xf32> to vector<128x128xf32>
      %29 = arith.addf %26, %28 : vector<128x128xf32>
      %c0_21 = arith.constant 0 : index
      %c0_22 = arith.constant 0 : index
      %30 = vector.load %arg7[%c0_21, %c0_22] : memref<128x128xf32, #tpu.memory_space<vmem>>, vector<128x128xf32>
      tpu.vector_store %arg7[%c0_21, %c0_22], %29 {strides = array<i32>} : memref<128x128xf32, #tpu.memory_space<vmem>>, vector<128x128xf32>,
    } else {
    }
    return
  }
  func.func @transform_0(%arg0: i32, %arg1: i32) -> (i32, i32) {
    %c0_i32 = arith.constant 0 : i32
    %c0_i32_0 = arith.constant 0 : i32
    return %arg0, %c0_i32 : i32, i32
  }
  func.func @transform_1(%arg0: i32, %arg1: i32) -> (i32, i32) {
    %c0_i32 = arith.constant 0 : i32
    %c0_i32_0 = arith.constant 0 : i32
    return %c0_i32, %arg1 : i32, i32
  }
  func.func @transform_2(%arg0: i32, %arg1: i32) -> (i32, i32) {
    %c0_i32 = arith.constant 0 : i32
    %c0_i32_0 = arith.constant 0 : i32
    return %c0_i32, %arg1 : i32, i32
  }
  func.func @transform_3(%arg0: i32, %arg1: i32) -> (i32, i32) {
    %c0_i32 = arith.constant 0 : i32
    %c0_i32_0 = arith.constant 0 : i32
    return %arg1, %c0_i32 : i32, i32
  }
  func.func @transform_4(%arg0: i32, %arg1: i32) -> (i32, i32) {
    %c0_i32 = arith.constant 0 : i32
    %c0_i32_0 = arith.constant 0 : i32
    %c0_i32_1 = arith.constant 0 : i32
    return %c0_i32, %c0_i32_0 : i32, i32
  }
  func.func @transform_5(%arg0: i32, %arg1: i32) -> (i32, i32) {
    %c0_i32 = arith.constant 0 : i32
    %c0_i32_0 = arith.constant 0 : i32
    return %arg0, %c0_i32 : i32, i32
  }
}

</mosaic_0001>

<llo_original>
// kernel: tpu_custom_call.1
$region0: #{tpu_custom_call.1}
  #allocation0 [shape = 'u32[]', space=smem, size = 0x4, offset = 0x4, fixed_abs, tag = 'smem constant byte address 0x4 - core index']
  #allocation1 [shape = 'u32[144,128]{1,0:T(1,128)}', space=vmem, size = 0x12000, scoped, tag = 'internal scratch']
  #allocation2 [shape = 'f32[128,128]{1,0:T(8,128)}', space=vmem, size = 0x10000, scoped, tag = 'scratch operand']
  %s0 = inlined_call_operand.hbm [shape: bf16[256,128], index: 0, kind: input, shape index: {}]
  %s1 = inlined_call_operand.hbm [shape: bf16[128,256], index: 1, kind: input, shape index: {}]
  %s2 = inlined_call_operand.vmem [shape: f32[1,256], index: 2, kind: input, shape index: {}]
  %s3 = inlined_call_operand.hbm [shape: bf16[256,128], index: 3, kind: input, shape index: {}]
  %s4 = inlined_call_operand.vmem [shape: f32[1,128], index: 4, kind: input, shape index: {}]
  %s5 = inlined_call_operand.hbm [shape: f32[256,128], index: 5, kind: output, shape index: {}]
  %s6 = sld [smem:[#allocation0]]
  $region73: #{tpu_custom_call.1} parent=0
    _
  %s8 = ssub.s32 1, %s6
  %s9 = scalar_select 0, %s8, %s6
  $region1: #{tpu_custom_call.1} parent=0
    #allocation3 [shape = 'u8[65536]{0}', space=vmem, size = 0x10000, scoped, tag = 'input window, operand 0']
    #allocation4 [shape = 's32[2]{0}', space=sflag, size = 0x8, scoped, tag = 'scoped memory for tpu_custom_call.1']
    #allocation5 [shape = 's32[2]{0}', space=sflag, size = 0x8, scoped, tag = 'scoped memory for tpu_custom_call.1']
    #allocation6 [shape = 'u8[65536]{0}', space=vmem, size = 0x10000, scoped, tag = 'input window, operand 1']
    #allocation7 [shape = 's32[2]{0}', space=sflag, size = 0x8, scoped, tag = 'scoped memory for tpu_custom_call.1']
    #allocation8 [shape = 'u8[65536]{0}', space=vmem, size = 0x10000, scoped, tag = 'input window, operand 3']
    #allocation9 [shape = 'u8[131072]{0}', space=vmem, size = 0x20000, scoped, tag = 'output window, operand 0']
    %10 = vsyncpa [#allocation4], 0
    %s11 = scalar_lea.sflag [#allocation4], 1
    %12 = vsyncpa %s11, 0
    %13 = vsyncpa [#allocation7], 0
    %s14 = scalar_lea.sflag [#allocation7], 1
    %15 = vsyncpa %s14, 0
    %16 = vsyncpa [#allocation5], 0
    %s17 = scalar_lea.sflag [#allocation5], 1
    %18 = vsyncpa %s17, 0
    loop: start=0, step=1, limit=6
    $region2: #{tpu_custom_call.1} parent=1 // loop_pre_header
      _
    $region3: #{tpu_custom_call.1} parent=1 // loop_header
      %s20 = sphi 0, %s24
      %p21 = scmp.ge.s32.totalorder %s20, 6
      %s27 = sphi 0, %s39
      %s28 = sphi 0, %s35
      %s29 = sphi 0, %s27
      %s30 = sphi 0, %s28
      %s31 = sphi 0, %s29
      %s32 = sphi 0, %s30
      %s42 = sphi 0, %s44
      %s45 = sphi 0, %s42
      %s46 = sphi 0, %s45
      %s62 = sphi 0, %s46
      %s68 = sphi 0, %s70
      %s71 = sphi 0, %s68
      %s72 = sphi 0, %s71
      %s88 = sphi 0, %s72
      %s94 = sphi 0, %s96
      %s97 = sphi 0, %s94
      %s98 = sphi 0, %s97
      %s114 = sphi 0, %s98
      %s120 = sphi 0, %s122
      %s123 = sphi 0, %s120
      %s124 = sphi 0, %s123
      %s140 = sphi 0, %s124
      %s144 = sphi 0, %s144
      %s146 = sphi 0, %s144
      %s147 = sphi 0, %s146
      %s161 = sphi 0, %s147
      %s167 = sphi 0, %s169
      %s170 = sphi 0, %s167
      %s171 = sphi 0, %s170
      %s187 = sphi 0, %s171
    $region4: #{tpu_custom_call.1} parent=1 // loop_header_branch
      %23 = sbr.rel (%p21) target = $region8
    $region5: #{tpu_custom_call.1} parent=1 // loop_body
      %s25 = ssub.s32 %s20, 1
      %s26 = ssub.s32 %s20, 2
      %s33 = sadd.s32 1, %s28
      %p34 = scmp.ge.s32.totalorder %s33, 2
      %s35 = scalar_select %p34, 0, %s33
      %s36 = sadd.s32 1, %s27
      %s37 = scalar_select %p34, %s36, %s27
      %p38 = scmp.ge.s32.totalorder %s37, 2
      %s39 = scalar_select %p38, 0, %s37
      %s40 = ssub.s32 %s27, %s39
      %p41 = scmp.eq.s32.totalorder %s40, 0
      %s43 = sadd.s32 %s42, 1
      %s44 = scalar_select %p41, %s42, %s43
      %p47 = pneg %p41
      %p48 = scmp.eq.s32.totalorder %s20, 3
      %p49 = por %p47, %p48
      %p50 = scmp.ne.s32.totalorder %s42, %s45
      %p51 = scmp.eq.s32.totalorder %s20, 0
      %p52 = por %p50, %p51
      %p53 = scmp.ne.s32.totalorder %s42, %s45
      %p54 = scmp.eq.s32.totalorder %s25, 3
      %p55 = por %p53, %p54
      %p56 = scmp.ne.s32.totalorder %s45, %s46
      %p57 = scmp.eq.s32.totalorder %s25, 0
      %p58 = por %p56, %p57
      %p59 = scmp.ne.s32.totalorder %s45, %s46
      %p60 = scmp.eq.s32.totalorder %s26, 3
      %p61 = por %p59, %p60
      %p63 = scmp.ne.s32.totalorder %s46, %s62
      %p64 = scmp.eq.s32.totalorder %s26, 0
      %p65 = por %p63, %p64
      %s66 = ssub.s32 %s28, %s35
      %p67 = scmp.eq.s32.totalorder %s66, 0
      %s69 = sadd.s32 %s68, 1
      %s70 = scalar_select %p67, %s68, %s69
      %p73 = pneg %p67
      %p74 = scmp.eq.s32.totalorder %s20, 3
      %p75 = por %p73, %p74
      %p76 = scmp.ne.s32.totalorder %s68, %s71
      %p77 = scmp.eq.s32.totalorder %s20, 0
      %p78 = por %p76, %p77
      %p79 = scmp.ne.s32.totalorder %s68, %s71
      %p80 = scmp.eq.s32.totalorder %s25, 3
      %p81 = por %p79, %p80
      %p82 = scmp.ne.s32.totalorder %s71, %s72
      %p83 = scmp.eq.s32.totalorder %s25, 0
      %p84 = por %p82, %p83
      %p85 = scmp.ne.s32.totalorder %s71, %s72
      %p86 = scmp.eq.s32.totalorder %s26, 3
      %p87 = por %p85, %p86
      %p89 = scmp.ne.s32.totalorder %s72, %s88
      %p90 = scmp.eq.s32.totalorder %s26, 0
      %p91 = por %p89, %p90
      %s92 = ssub.s32 %s28, %s35
      %p93 = scmp.eq.s32.totalorder %s92, 0
      %s95 = sadd.s32 %s94, 1
      %s96 = scalar_select %p93, %s94, %s95
      %p99 = pneg %p93
      %p100 = scmp.eq.s32.totalorder %s20, 3
      %p101 = por %p99, %p100
      %p102 = scmp.ne.s32.totalorder %s94, %s97
      %p103 = scmp.eq.s32.totalorder %s20, 0
      %p104 = por %p102, %p103
      %p105 = scmp.ne.s32.totalorder %s94, %s97
      %p106 = scmp.eq.s32.totalorder %s25, 3
      %p107 = por %p105, %p106
      %p108 = scmp.ne.s32.totalorder %s97, %s98
      %p109 = scmp.eq.s32.totalorder %s25, 0
      %p110 = por %p108, %p109
      %p111 = scmp.ne.s32.totalorder %s97, %s98
      %p112 = scmp.eq.s32.totalorder %s26, 3
      %p113 = por %p111, %p112
      %p115 = scmp.ne.s32.totalorder %s98, %s114
      %p116 = scmp.eq.s32.totalorder %s26, 0
      %p117 = por %p115, %p116
      %s118 = ssub.s32 %s28, %s35
      %p119 = scmp.eq.s32.totalorder %s118, 0
      %s121 = sadd.s32 %s120, 1
      %s122 = scalar_select %p119, %s120, %s121
      %p125 = pneg %p119
      %p126 = scmp.eq.s32.totalorder %s20, 3
      %p127 = por %p125, %p126
      %p128 = scmp.ne.s32.totalorder %s120, %s123
      %p129 = scmp.eq.s32.totalorder %s20, 0
      %p130 = por %p128, %p129
      %p131 = scmp.ne.s32.totalorder %s120, %s123
      %p132 = scmp.eq.s32.totalorder %s25, 3
      %p133 = por %p131, %p132
      %p134 = scmp.ne.s32.totalorder %s123, %s124
      %p135 = scmp.eq.s32.totalorder %s25, 0
      %p136 = por %p134, %p135
      %p137 = scmp.ne.s32.totalorder %s123, %s124
      %p138 = scmp.eq.s32.totalorder %s26, 3
      %p139 = por %p137, %p138
      %p141 = scmp.ne.s32.totalorder %s124, %s140
      %p142 = scmp.eq.s32.totalorder %s26, 0
      %p143 = por %p141, %p142
      %s145 = sadd.s32 %s144, 1
      %p148 = scmp.eq.s32.totalorder %s20, 3
      %p149 = scmp.ne.s32.totalorder %s144, %s146
      %p150 = scmp.eq.s32.totalorder %s20, 0
      %p151 = por %p149, %p150
      %p152 = scmp.ne.s32.totalorder %s144, %s146
      %p153 = scmp.eq.s32.totalorder %s25, 3
      %p154 = por %p152, %p153
      %p155 = scmp.ne.s32.totalorder %s146, %s147
      %p156 = scmp.eq.s32.totalorder %s25, 0
      %p157 = por %p155, %p156
      %p158 = scmp.ne.s32.totalorder %s146, %s147
      %p159 = scmp.eq.s32.totalorder %s26, 3
      %p160 = por %p158, %p159
      %p162 = scmp.ne.s32.totalorder %s147, %s161
      %p163 = scmp.eq.s32.totalorder %s26, 0
      %p164 = por %p162, %p163
      %s165 = ssub.s32 %s27, %s39
      %p166 = scmp.eq.s32.totalorder %s165, 0
      %s168 = sadd.s32 %s167, 1
      %s169 = scalar_select %p166, %s167, %s168
      %p172 = pneg %p166
      %p173 = scmp.eq.s32.totalorder %s20, 3
      %p174 = por %p172, %p173
      %p175 = scmp.ne.s32.totalorder %s167, %s170
      %p176 = scmp.eq.s32.totalorder %s20, 0
      %p177 = por %p175, %p176
      %p178 = scmp.ne.s32.totalorder %s167, %s170
      %p179 = scmp.eq.s32.totalorder %s25, 3
      %p180 = por %p178, %p179
      %p181 = scmp.ne.s32.totalorder %s170, %s171
      %p182 = scmp.eq.s32.totalorder %s25, 0
      %p183 = por %p181, %p182
      %p184 = scmp.ne.s32.totalorder %s170, %s171
      %p185 = scmp.eq.s32.totalorder %s26, 3
      %p186 = por %p184, %p185
      %p188 = scmp.ne.s32.totalorder %s171, %s187
      %p189 = scmp.eq.s32.totalorder %s26, 0
      %p190 = por %p188, %p189
      %p191 = scmp.le.s32.totalorder 1, %s20
      %p192 = scmp.lt.s32.totalorder %s20, 5
      %p193 = pnand %p191, %p192
      %p194 = pneg %p193
      // Predicated region
      $region9: #{tpu_custom_call.1} parent=5 // pred_check
        _
      $region10: #{tpu_custom_call.1} parent=5 // pred_check_branch
        %196 = sbr.rel (%p193) target = $region12
      $region11: #{tpu_custom_call.1} parent=5 // pred_region
        %s197 = ssub.s32 %s20, 1
        // Predicated region
        $region13: #{tpu_custom_call.1} parent=11 // pred_check
          %p198 = pneg %p157
        $region14: #{tpu_custom_call.1} parent=11 // pred_check_branch
          %200 = sbr.rel (%p198) target = $region16
        $region15: #{tpu_custom_call.1} parent=11 // pred_region
          _
        $region16: #{tpu_custom_call.1} parent=11 // pred_fallthru
          _
      $region12: #{tpu_custom_call.1} parent=5 // pred_fallthru
        _
      %p201 = scmp.lt.s32.totalorder %s20, 4
      // Predicated region
      $region17: #{tpu_custom_call.1} parent=5 // pred_check
        %p202 = pneg %p201
      $region18: #{tpu_custom_call.1} parent=5 // pred_check_branch
        %204 = sbr.rel (%p202) target = $region20
      $region19: #{tpu_custom_call.1} parent=5 // pred_region
        // Predicated region
        $region21: #{tpu_custom_call.1} parent=19 // pred_check
          %p205 = pneg %p52
        $region22: #{tpu_custom_call.1} parent=19 // pred_check_branch
          %207 = sbr.rel (%p205) target = $region24
        $region23: #{tpu_custom_call.1} parent=19 // pred_region
          %s208 = sand.u32 %s42, 1
          %s209 = scalar_lea.sflag [#allocation4], %s208
          %s210 = sand.u32 %s42, 1
          %s211 = smul.addr %s210, 64
          %s212 = scalar_lea.vmem [#allocation3], %s211
          %s213 = smul.u32 16, %s27
          %s215 = ssub.s32 1024, 1024
          %216 = vsyncadd %s209, %s215
          %s217 = smul.addr %s213, 64
          %s218 = scalar_lea.hbm %s0, %s217
          %s219 = sshll.u32 %s212, 4
          %s220 = int_to_ptr.vmem [resolvable:$true] %s219
          %225 = dma.hbm_to_vmem [thread:$0]  %s218, 1024, %s220, %s209, 64, 64, 4
        $region24: #{tpu_custom_call.1} parent=19 // pred_fallthru
          _
        // Predicated region
        $region25: #{tpu_custom_call.1} parent=19 // pred_check
          %p226 = pneg %p78
        $region26: #{tpu_custom_call.1} parent=19 // pred_check_branch
          %228 = sbr.rel (%p226) target = $region28
        $region27: #{tpu_custom_call.1} parent=19 // pred_region
          %s229 = sand.u32 %s20, 1
          %s230 = scalar_lea.sflag [#allocation7], %s229
          %s231 = sand.u32 %s68, 1
          %s232 = smul.addr %s231, 64
          %s233 = scalar_lea.vmem [#allocation6], %s232
          %s235 = ssub.s32 1024, 1024
          %236 = vsyncadd %s230, %s235
          %s237 = smul.addr %s28, 64
          %s238 = scalar_lea.hbm %s1, %s237
          %s239 = sshll.u32 %s233, 4
          %s240 = int_to_ptr.vmem [resolvable:$true] %s239
          %245 = dma.hbm_to_vmem [thread:$0]  %s238, 1024, %s240, %s230, 128, 64, 4
        $region28: #{tpu_custom_call.1} parent=19 // pred_fallthru
          _
        // Predicated region
        $region29: #{tpu_custom_call.1} parent=19 // pred_check
          %p246 = pneg %p104
        $region30: #{tpu_custom_call.1} parent=19 // pred_check_branch
          %248 = sbr.rel (%p246) target = $region32
        $region31: #{tpu_custom_call.1} parent=19 // pred_region
          %p249 = scmp.lt.s32.totalorder %s28, 1
          %s250 = scalar_select %p249, %s28, 1
          %s251 = scalar_lea.vmem %s2, %s250
        $region32: #{tpu_custom_call.1} parent=19 // pred_fallthru
          _
        // Predicated region
        $region33: #{tpu_custom_call.1} parent=19 // pred_check
          %p252 = pneg %p130
        $region34: #{tpu_custom_call.1} parent=19 // pred_check_branch
          %254 = sbr.rel (%p252) target = $region36
        $region35: #{tpu_custom_call.1} parent=19 // pred_region
          %s255 = sand.u32 %s20, 1
          %s256 = scalar_lea.sflag [#allocation7], %s255
          %s257 = sand.u32 %s120, 1
          %s258 = smul.addr %s257, 64
          %s259 = scalar_lea.vmem [#allocation8], %s258
          %s260 = smul.u32 16, %s28
          %s262 = ssub.s32 1024, 1024
          %263 = vsyncadd %s256, %s262
          %s264 = smul.addr %s260, 64
          %s265 = scalar_lea.hbm %s3, %s264
          %s266 = sshll.u32 %s259, 4
          %s267 = int_to_ptr.vmem [resolvable:$true] %s266
          %272 = dma.hbm_to_vmem [thread:$0]  %s265, 1024, %s267, %s256, 64, 64, 4
        $region36: #{tpu_custom_call.1} parent=19 // pred_fallthru
          _
      $region20: #{tpu_custom_call.1} parent=5 // pred_fallthru
        _
      %p273 = scmp.le.s32.totalorder 1, %s20
      %p274 = scmp.lt.s32.totalorder %s20, 5
      %p275 = pnand %p273, %p274
      %p276 = pneg %p275
      // Predicated region
      $region37: #{tpu_custom_call.1} parent=5 // pred_check
        _
      $region38: #{tpu_custom_call.1} parent=5 // pred_check_branch
        %278 = sbr.rel (%p275) target = $region40
      $region39: #{tpu_custom_call.1} parent=5 // pred_region
        %s279 = ssub.s32 %s20, 1
        %s280 = sand.u32 %s45, 1
        %s281 = scalar_lea.sflag [#allocation4], %s280
        %s282 = sand.u32 %s45, 1
        %s283 = smul.addr %s282, 64
        %s284 = scalar_lea.vmem [#allocation3], %s283
        // Predicated region
        $region41: #{tpu_custom_call.1} parent=39 // pred_check
          %p285 = pneg %p58
        $region42: #{tpu_custom_call.1} parent=39 // pred_check_branch
          %287 = sbr.rel (%p285) target = $region44
        $region43: #{tpu_custom_call.1} parent=39 // pred_region
          %288 = dma.done %s281, 1024
        $region44: #{tpu_custom_call.1} parent=39 // pred_fallthru
          _
        %s289 = sand.u32 %s25, 1
        %s290 = scalar_lea.sflag [#allocation7], %s289
        %s291 = sand.u32 %s71, 1
        %s292 = smul.addr %s291, 64
        %s293 = scalar_lea.vmem [#allocation6], %s292
        // Predicated region
        $region45: #{tpu_custom_call.1} parent=39 // pred_check
          %p294 = pneg %p84
        $region46: #{tpu_custom_call.1} parent=39 // pred_check_branch
          %296 = sbr.rel (%p294) target = $region48
        $region47: #{tpu_custom_call.1} parent=39 // pred_region
          %297 = dma.done %s290, 1024
        $region48: #{tpu_custom_call.1} parent=39 // pred_fallthru
          _
        %s298 = sand.u32 %s25, 1
        %s299 = scalar_lea.sflag [#allocation7], %s298
        %s300 = sand.u32 %s123, 1
        %s301 = smul.addr %s300, 64
        %s302 = scalar_lea.vmem [#allocation8], %s301
        // Predicated region
        $region49: #{tpu_custom_call.1} parent=39 // pred_check
          %p303 = pneg %p136
        $region50: #{tpu_custom_call.1} parent=39 // pred_check_branch
          %305 = sbr.rel (%p303) target = $region52
        $region51: #{tpu_custom_call.1} parent=39 // pred_region
          %306 = dma.done %s299, 1024
        $region52: #{tpu_custom_call.1} parent=39 // pred_fallthru
          _
        %s307 = sand.u32 %s45, 1
        %s308 = scalar_lea.sflag [#allocation4], %s307
        %s309 = sand.u32 %s45, 1
        %s310 = smul.addr %s309, 64
        %s311 = scalar_lea.vmem [#allocation3], %s310
        %p312 = pneg %p58
        %p313 = pneg %p55
        %s314 = sand.u32 %s25, 1
        %s315 = scalar_lea.sflag [#allocation7], %s314
        %s316 = sand.u32 %s71, 1
        %s317 = smul.addr %s316, 64
        %s318 = scalar_lea.vmem [#allocation6], %s317
        %p319 = pneg %p84
        %p320 = pneg %p81
        %p321 = scmp.lt.s32.totalorder %s30, 1
        %s322 = scalar_select %p321, %s30, 1
        %s323 = scalar_lea.vmem %s2, %s322
        %p324 = pneg %p110
        %p325 = pneg %p107
        %s326 = sand.u32 %s25, 1
        %s327 = scalar_lea.sflag [#allocation7], %s326
        %s328 = sand.u32 %s123, 1
        %s329 = smul.addr %s328, 64
        %s330 = scalar_lea.vmem [#allocation8], %s329
        %p331 = pneg %p136
        %p332 = pneg %p133
        %p333 = pneg %p157
        %p334 = pneg %p154
        %p335 = pneg %p183
        %p336 = pneg %p180
        %s337 = sand.u32 %s170, 1
        %s338 = scalar_lea.sflag [#allocation5], %s337
        %s339 = sand.u32 %s170, 1
        %s340 = smul.addr %s339, 128
        %s341 = scalar_lea.vmem [#allocation9], %s340
        %s342 = smul.u32 16, %s29
        %p343 = scmp.lt.s32.totalorder %s30, 1
        %s344 = scalar_select %p343, %s30, 1
        %s345 = scalar_lea.vmem %s2, %s344
        %s346 = smul.u32 16, %s30
        %s347 = smul.u32 16, %s29
        %p349 = scmp.eq.s32.totalorder %s30, 0
        // Predicated region
        $region53: #{tpu_custom_call.1} parent=39 // pred_check
          %p350 = pneg %p349
        $region54: #{tpu_custom_call.1} parent=39 // pred_check_branch
          %352 = sbr.rel (%p350) target = $region56
        $region55: #{tpu_custom_call.1} parent=39 // pred_region
          %353 = vst [vmem:[#allocation2] sm:$0xff] 0.0
          %354 = vst [vmem:[#allocation2 + $0x8] sm:$0xff] 0.0
          %355 = vst [vmem:[#allocation2 + $0x10] sm:$0xff] 0.0
          %356 = vst [vmem:[#allocation2 + $0x18] sm:$0xff] 0.0
          %357 = vst [vmem:[#allocation2 + $0x20] sm:$0xff] 0.0
          %358 = vst [vmem:[#allocation2 + $0x28] sm:$0xff] 0.0
          %359 = vst [vmem:[#allocation2 + $0x30] sm:$0xff] 0.0
          %360 = vst [vmem:[#allocation2 + $0x38] sm:$0xff] 0.0
          %361 = vst [vmem:[#allocation2 + $0x40] sm:$0xff] 0.0
          %362 = vst [vmem:[#allocation2 + $0x48] sm:$0xff] 0.0
          %363 = vst [vmem:[#allocation2 + $0x50] sm:$0xff] 0.0
          %364 = vst [vmem:[#allocation2 + $0x58] sm:$0xff] 0.0
          %365 = vst [vmem:[#allocation2 + $0x60] sm:$0xff] 0.0
          %366 = vst [vmem:[#allocation2 + $0x68] sm:$0xff] 0.0
          %367 = vst [vmem:[#allocation2 + $0x70] sm:$0xff] 0.0
          %368 = vst [vmem:[#allocation2 + $0x78] sm:$0xff] 0.0
        $region56: #{tpu_custom_call.1} parent=39 // pred_fallthru
          _
        %v369 = vld [vmem:[%s284] sm:$0xf]
        %v370 = vld [vmem:[%s284 + $0x4] sm:$0xf]
        %v371 = vld [vmem:[%s284 + $0x8] sm:$0xf]
        %v372 = vld [vmem:[%s284 + $0xc] sm:$0xf]
        %v373 = vld [vmem:[%s284 + $0x10] sm:$0xf]
        %v374 = vld [vmem:[%s284 + $0x14] sm:$0xf]
        %v375 = vld [vmem:[%s284 + $0x18] sm:$0xf]
        %v376 = vld [vmem:[%s284 + $0x1c] sm:$0xf]
        %v377 = vld [vmem:[%s284 + $0x20] sm:$0xf]
        %v378 = vld [vmem:[%s284 + $0x24] sm:$0xf]
        %v379 = vld [vmem:[%s284 + $0x28] sm:$0xf]
        %v380 = vld [vmem:[%s284 + $0x2c] sm:$0xf]
        %v381 = vld [vmem:[%s284 + $0x30] sm:$0xf]
        %v382 = vld [vmem:[%s284 + $0x34] sm:$0xf]
        %v383 = vld [vmem:[%s284 + $0x38] sm:$0xf]
        %v384 = vld [vmem:[%s284 + $0x3c] sm:$0xf]
        %v385 = vld [vmem:[%s293] sm:$0xf]
        %v386 = vld [vmem:[%s293 + $0x4] sm:$0xf]
        %v387 = vld [vmem:[%s293 + $0x8] sm:$0xf]
        %v388 = vld [vmem:[%s293 + $0xc] sm:$0xf]
        %v389 = vld [vmem:[%s293 + $0x10] sm:$0xf]
        %v390 = vld [vmem:[%s293 + $0x14] sm:$0xf]
        %v391 = vld [vmem:[%s293 + $0x18] sm:$0xf]
        %v392 = vld [vmem:[%s293 + $0x1c] sm:$0xf]
        %v393 = vld [vmem:[%s293 + $0x20] sm:$0xf]
        %v394 = vld [vmem:[%s293 + $0x24] sm:$0xf]
        %v395 = vld [vmem:[%s293 + $0x28] sm:$0xf]
        %v396 = vld [vmem:[%s293 + $0x2c] sm:$0xf]
        %v397 = vld [vmem:[%s293 + $0x30] sm:$0xf]
        %v398 = vld [vmem:[%s293 + $0x34] sm:$0xf]
        %v399 = vld [vmem:[%s293 + $0x38] sm:$0xf]
        %v400 = vld [vmem:[%s293 + $0x3c] sm:$0xf]
        %v401 = vld [vmem:[%s345] sm:$0x1]
        %v403 = vlaneseq
        %v404 = vshrl.u32 %v403, 7
        %v405 = vsub.s32 0, %v404
        %v406 = vrot.slane %v401, %v405
        %v424 = vunpack.c.l.b16 %v369
        %v425 = vunpack.c.l.b16 %v370
        %v426 = vunpack.c.l.b16 %v371
        %v427 = vunpack.c.l.b16 %v372
        %v428 = vunpack.c.l.b16 %v373
        %v429 = vunpack.c.l.b16 %v374
        %v430 = vunpack.c.l.b16 %v375
        %v431 = vunpack.c.l.b16 %v376
        %v432 = vunpack.c.l.b16 %v377
        %v433 = vunpack.c.l.b16 %v378
        %v434 = vunpack.c.l.b16 %v379
        %v435 = vunpack.c.l.b16 %v380
        %v436 = vunpack.c.l.b16 %v381
        %v437 = vunpack.c.l.b16 %v382
        %v438 = vunpack.c.l.b16 %v383
        %v439 = vunpack.c.l.b16 %v384
        %v440 = vpack.c.b16 %v425, %v424
        %v441 = vpack.c.b16 %v427, %v426
        %v442 = vpack.c.b16 %v429, %v428
        %v443 = vpack.c.b16 %v431, %v430
        %v444 = vpack.c.b16 %v433, %v432
        %v445 = vpack.c.b16 %v435, %v434
        %v446 = vpack.c.b16 %v437, %v436
        %v447 = vpack.c.b16 %v439, %v438
        %v472 = vunpack.c.l.b16 %v385
        %v473 = vunpack.c.l.b16 %v386
        %v474 = vunpack.c.l.b16 %v387
        %v475 = vunpack.c.l.b16 %v388
        %v476 = vunpack.c.l.b16 %v389
        %v477 = vunpack.c.l.b16 %v390
        %v478 = vunpack.c.l.b16 %v391
        %v479 = vunpack.c.l.b16 %v392
        %v480 = vunpack.c.l.b16 %v393
        %v481 = vunpack.c.l.b16 %v394
        %v482 = vunpack.c.l.b16 %v395
        %v483 = vunpack.c.l.b16 %v396
        %v484 = vunpack.c.l.b16 %v397
        %v485 = vunpack.c.l.b16 %v398
        %v486 = vunpack.c.l.b16 %v399
        %v487 = vunpack.c.l.b16 %v400
        %v488 = vpack.c.b16 %v473, %v472
        %v489 = vpack.c.b16 %v475, %v474
        %v490 = vpack.c.b16 %v477, %v476
        %v491 = vpack.c.b16 %v479, %v478
        %v492 = vpack.c.b16 %v481, %v480
        %v493 = vpack.c.b16 %v483, %v482
        %v494 = vpack.c.b16 %v485, %v484
        %v495 = vpack.c.b16 %v487, %v486
        %504 = vmatprep.subr.bf16.mxu0 0
        %505 = vmatpush1.bf16.msra.mxu0 %v495
        %506 = vmatprep.subr.bf16.mxu0 0
        %507 = vmatpush1.bf16.msra.mxu0 %v494
        %508 = vmatprep.subr.bf16.mxu0 0
        %509 = vmatpush1.bf16.msra.mxu0 %v493
        %510 = vmatprep.subr.bf16.mxu0 0
        %511 = vmatpush1.bf16.msra.mxu0 %v492
        %512 = vmatprep.subr.bf16.mxu0 0
        %513 = vmatpush1.bf16.msra.mxu0 %v491
        %514 = vmatprep.subr.bf16.mxu0 0
        %515 = vmatpush1.bf16.msra.mxu0 %v490
        %516 = vmatprep.subr.bf16.mxu0 0
        %517 = vmatpush1.bf16.msra.mxu0 %v489
        %518 = vmatprep.subr.bf16.mxu0 0
        %519 = vmatpush1.bf16.msra.mxu0 %v488
        %520 = vmatprep.subr.bf16.mxu0 0
        %521 = vmatpush2.bf16.msra.mxu0 0
        %522 = vmatprep.subr.bf16.mxu0 0
        %523 = vmatpush2.bf16.msra.mxu0 0
        %524 = vmatprep.subr.bf16.mxu0 0
        %525 = vmatpush2.bf16.msra.mxu0 0
        %526 = vmatprep.subr.bf16.mxu0 0
        %527 = vmatpush2.bf16.msra.mxu0 0
        %528 = vmatprep.subr.bf16.mxu0 0
        %529 = vmatpush2.bf16.msra.mxu0 0
        %530 = vmatprep.subr.bf16.mxu0 0
        %531 = vmatpush2.bf16.msra.mxu0 0
        %532 = vmatprep.subr.bf16.mxu0 0
        %533 = vmatpush2.bf16.msra.mxu0 0
        %534 = vmatprep.subr.bf16.mxu0 0
        %535 = vmatpush2.bf16.msra.mxu0 0
        %536 = vmatprep.mubr.bf16.mxu0 0
        %537 = vmatmul.mubr.bf16.gmra.mxu0 %v440
        %v538 = vpop.f32.mrf.mxu0
        %v539 = vadd.f32 %v406, %v538
        %v540 = vpop.f32.mrf.mxu0
        %v541 = vpop.f32.mrf.mxu0
        %v542 = vadd.f32 %v406, %v541
        %v543 = vpop.f32.mrf.mxu0
        %544 = vmatprep.mubr.bf16.mxu0 0
        %545 = vmatmul.mubr.bf16.gmra.mxu0 %v441
        %v546 = vpop.f32.mrf.mxu0
        %v547 = vadd.f32 %v406, %v546
        %v548 = vpop.f32.mrf.mxu0
        %v549 = vpop.f32.mrf.mxu0
        %v550 = vadd.f32 %v406, %v549
        %v551 = vpop.f32.mrf.mxu0
        %552 = vmatprep.mubr.bf16.mxu0 0
        %553 = vmatmul.mubr.bf16.gmra.mxu0 %v442
        %v554 = vpop.f32.mrf.mxu0
        %v555 = vadd.f32 %v406, %v554
        %v556 = vpop.f32.mrf.mxu0
        %v557 = vpop.f32.mrf.mxu0
        %v558 = vadd.f32 %v406, %v557
        %v559 = vpop.f32.mrf.mxu0
        %560 = vmatprep.mubr.bf16.mxu0 0
        %561 = vmatmul.mubr.bf16.gmra.mxu0 %v443
        %v562 = vpop.f32.mrf.mxu0
        %v563 = vadd.f32 %v406, %v562
        %v564 = vpop.f32.mrf.mxu0
        %v565 = vpop.f32.mrf.mxu0
        %v566 = vadd.f32 %v406, %v565
        %v567 = vpop.f32.mrf.mxu0
        %568 = vmatprep.mubr.bf16.mxu0 0
        %569 = vmatmul.mubr.bf16.gmra.mxu0 %v444
        %v570 = vpop.f32.mrf.mxu0
        %v571 = vadd.f32 %v406, %v570
        %v572 = vpop.f32.mrf.mxu0
        %v573 = vpop.f32.mrf.mxu0
        %v574 = vadd.f32 %v406, %v573
        %v575 = vpop.f32.mrf.mxu0
        %576 = vmatprep.mubr.bf16.mxu0 0
        %577 = vmatmul.mubr.bf16.gmra.mxu0 %v445
        %v578 = vpop.f32.mrf.mxu0
        %v579 = vadd.f32 %v406, %v578
        %v580 = vpop.f32.mrf.mxu0
        %v581 = vpop.f32.mrf.mxu0
        %v582 = vadd.f32 %v406, %v581
        %v583 = vpop.f32.mrf.mxu0
        %584 = vmatprep.mubr.bf16.mxu0 0
        %585 = vmatmul.mubr.bf16.gmra.mxu0 %v446
        %v586 = vpop.f32.mrf.mxu0
        %v587 = vadd.f32 %v406, %v586
        %v588 = vpop.f32.mrf.mxu0
        %v589 = vpop.f32.mrf.mxu0
        %v590 = vadd.f32 %v406, %v589
        %v591 = vpop.f32.mrf.mxu0
        %592 = vmatprep.mubr.bf16.mxu0 0
        %593 = vmatmul.mubr.bf16.gmra.mxu0 %v447
        %v594 = vpop.f32.mrf.mxu0
        %v595 = vadd.f32 %v406, %v594
        %v596 = vpop.f32.mrf.mxu0
        %v597 = vpop.f32.mrf.mxu0
        %v598 = vadd.f32 %v406, %v597
        %v599 = vpop.f32.mrf.mxu0
        %600 = vdwg.mxu0
        %v601 = vmul.f32 %v539, 0.5
        %v602 = vmul.f32 %v542, 0.5
        %v603 = vmul.f32 %v547, 0.5
        %v604 = vmul.f32 %v550, 0.5
        %v605 = vmul.f32 %v555, 0.5
        %v606 = vmul.f32 %v558, 0.5
        %v607 = vmul.f32 %v563, 0.5
        %v608 = vmul.f32 %v566, 0.5
        %v609 = vmul.f32 %v571, 0.5
        %v610 = vmul.f32 %v574, 0.5
        %v611 = vmul.f32 %v579, 0.5
        %v612 = vmul.f32 %v582, 0.5
        %v613 = vmul.f32 %v587, 0.5
        %v614 = vmul.f32 %v590, 0.5
        %v615 = vmul.f32 %v595, 0.5
        %v616 = vmul.f32 %v598, 0.5
        %v617 = vmul.f32 %v539, 0.70710677
        %v618 = vmul.f32 %v542, 0.70710677
        %v619 = vmul.f32 %v547, 0.70710677
        %v620 = vmul.f32 %v550, 0.70710677
        %v621 = vmul.f32 %v555, 0.70710677
        %v622 = vmul.f32 %v558, 0.70710677
        %v623 = vmul.f32 %v563, 0.70710677
        %v624 = vmul.f32 %v566, 0.70710677
        %v625 = vmul.f32 %v571, 0.70710677
        %v626 = vmul.f32 %v574, 0.70710677
        %v627 = vmul.f32 %v579, 0.70710677
        %v628 = vmul.f32 %v582, 0.70710677
        %v629 = vmul.f32 %v587, 0.70710677
        %v630 = vmul.f32 %v590, 0.70710677
        %v631 = vmul.f32 %v595, 0.70710677
        %v632 = vmul.f32 %v598, 0.70710677
        %v633 = verf.f32.pop %v617
        %v634 = verf.f32.pop %v618
        %v635 = verf.f32.pop %v619
        %v636 = verf.f32.pop %v620
        %v637 = verf.f32.pop %v621
        %v638 = verf.f32.pop %v622
        %v639 = verf.f32.pop %v623
        %v640 = verf.f32.pop %v624
        %v641 = verf.f32.pop %v625
        %v642 = verf.f32.pop %v626
        %v643 = verf.f32.pop %v627
        %v644 = verf.f32.pop %v628
        %v645 = verf.f32.pop %v629
        %v646 = verf.f32.pop %v630
        %v647 = verf.f32.pop %v631
        %v648 = verf.f32.pop %v632
        %v649 = vadd.f32 %v633, 1.0
        %v650 = vadd.f32 %v634, 1.0
        %v651 = vadd.f32 %v635, 1.0
        %v652 = vadd.f32 %v636, 1.0
        %v653 = vadd.f32 %v637, 1.0
        %v654 = vadd.f32 %v638, 1.0
        %v655 = vadd.f32 %v639, 1.0
        %v656 = vadd.f32 %v640, 1.0
        %v657 = vadd.f32 %v641, 1.0
        %v658 = vadd.f32 %v642, 1.0
        %v659 = vadd.f32 %v643, 1.0
        %v660 = vadd.f32 %v644, 1.0
        %v661 = vadd.f32 %v645, 1.0
        %v662 = vadd.f32 %v646, 1.0
        %v663 = vadd.f32 %v647, 1.0
        %v664 = vadd.f32 %v648, 1.0
        %v665 = vmul.f32 %v601, %v649
        %v666 = vmul.f32 %v602, %v650
        %v667 = vmul.f32 %v603, %v651
        %v668 = vmul.f32 %v604, %v652
        %v669 = vmul.f32 %v605, %v653
        %v670 = vmul.f32 %v606, %v654
        %v671 = vmul.f32 %v607, %v655
        %v672 = vmul.f32 %v608, %v656
        %v673 = vmul.f32 %v609, %v657
        %v674 = vmul.f32 %v610, %v658
        %v675 = vmul.f32 %v611, %v659
        %v676 = vmul.f32 %v612, %v660
        %v677 = vmul.f32 %v613, %v661
        %v678 = vmul.f32 %v614, %v662
        %v679 = vmul.f32 %v615, %v663
        %v680 = vmul.f32 %v616, %v664
        %v681 = vld [vmem:[#allocation2] sm:$0xff]
        %v682 = vld [vmem:[#allocation2 + $0x8] sm:$0xff]
        %v683 = vld [vmem:[#allocation2 + $0x10] sm:$0xff]
        %v684 = vld [vmem:[#allocation2 + $0x18] sm:$0xff]
        %v685 = vld [vmem:[#allocation2 + $0x20] sm:$0xff]
        %v686 = vld [vmem:[#allocation2 + $0x28] sm:$0xff]
        %v687 = vld [vmem:[#allocation2 + $0x30] sm:$0xff]
        %v688 = vld [vmem:[#allocation2 + $0x38] sm:$0xff]
        %v689 = vld [vmem:[#allocation2 + $0x40] sm:$0xff]
        %v690 = vld [vmem:[#allocation2 + $0x48] sm:$0xff]
        %v691 = vld [vmem:[#allocation2 + $0x50] sm:$0xff]
        %v692 = vld [vmem:[#allocation2 + $0x58] sm:$0xff]
        %v693 = vld [vmem:[#allocation2 + $0x60] sm:$0xff]
        %v694 = vld [vmem:[#allocation2 + $0x68] sm:$0xff]
        %v695 = vld [vmem:[#allocation2 + $0x70] sm:$0xff]
        %v696 = vld [vmem:[#allocation2 + $0x78] sm:$0xff]
        %v697 = vpack.c.bf16 %v666, %v665
        %v698 = vpack.c.bf16 %v668, %v667
        %v699 = vpack.c.bf16 %v670, %v669
        %v700 = vpack.c.bf16 %v672, %v671
        %v701 = vpack.c.bf16 %v674, %v673
        %v702 = vpack.c.bf16 %v676, %v675
        %v703 = vpack.c.bf16 %v678, %v677
        %v704 = vpack.c.bf16 %v680, %v679
        %v705 = vld [vmem:[%s302] sm:$0xf]
        %v706 = vld [vmem:[%s302 + $0x4] sm:$0xf]
        %v707 = vld [vmem:[%s302 + $0x8] sm:$0xf]
        %v708 = vld [vmem:[%s302 + $0xc] sm:$0xf]
        %v709 = vld [vmem:[%s302 + $0x10] sm:$0xf]
        %v710 = vld [vmem:[%s302 + $0x14] sm:$0xf]
        %v711 = vld [vmem:[%s302 + $0x18] sm:$0xf]
        %v712 = vld [vmem:[%s302 + $0x1c] sm:$0xf]
        %v713 = vld [vmem:[%s302 + $0x20] sm:$0xf]
        %v714 = vld [vmem:[%s302 + $0x24] sm:$0xf]
        %v715 = vld [vmem:[%s302 + $0x28] sm:$0xf]
        %v716 = vld [vmem:[%s302 + $0x2c] sm:$0xf]
        %v717 = vld [vmem:[%s302 + $0x30] sm:$0xf]
        %v718 = vld [vmem:[%s302 + $0x34] sm:$0xf]
        %v719 = vld [vmem:[%s302 + $0x38] sm:$0xf]
        %v720 = vld [vmem:[%s302 + $0x3c] sm:$0xf]
        %v737 = vunpack.c.l.b16 %v705
        %v738 = vunpack.c.l.b16 %v706
        %v739 = vunpack.c.l.b16 %v707
        %v740 = vunpack.c.l.b16 %v708
        %v741 = vunpack.c.l.b16 %v709
        %v742 = vunpack.c.l.b16 %v710
        %v743 = vunpack.c.l.b16 %v711
        %v744 = vunpack.c.l.b16 %v712
        %v745 = vunpack.c.l.b16 %v713
        %v746 = vunpack.c.l.b16 %v714
        %v747 = vunpack.c.l.b16 %v715
        %v748 = vunpack.c.l.b16 %v716
        %v749 = vunpack.c.l.b16 %v717
        %v750 = vunpack.c.l.b16 %v718
        %v751 = vunpack.c.l.b16 %v719
        %v752 = vunpack.c.l.b16 %v720
        %v753 = vpack.c.b16 %v738, %v737
        %v754 = vpack.c.b16 %v740, %v739
        %v755 = vpack.c.b16 %v742, %v741
        %v756 = vpack.c.b16 %v744, %v743
        %v757 = vpack.c.b16 %v746, %v745
        %v758 = vpack.c.b16 %v748, %v747
        %v759 = vpack.c.b16 %v750, %v749
        %v760 = vpack.c.b16 %v752, %v751
        %769 = vmatprep.subr.bf16.mxu0 0
        %770 = vmatpush1.bf16.msra.mxu0 %v760
        %771 = vmatprep.subr.bf16.mxu0 0
        %772 = vmatpush1.bf16.msra.mxu0 %v759
        %773 = vmatprep.subr.bf16.mxu0 0
        %774 = vmatpush1.bf16.msra.mxu0 %v758
        %775 = vmatprep.subr.bf16.mxu0 0
        %776 = vmatpush1.bf16.msra.mxu0 %v757
        %777 = vmatprep.subr.bf16.mxu0 0
        %778 = vmatpush1.bf16.msra.mxu0 %v756
        %779 = vmatprep.subr.bf16.mxu0 0
        %780 = vmatpush1.bf16.msra.mxu0 %v755
        %781 = vmatprep.subr.bf16.mxu0 0
        %782 = vmatpush1.bf16.msra.mxu0 %v754
        %783 = vmatprep.subr.bf16.mxu0 0
        %784 = vmatpush1.bf16.msra.mxu0 %v753
        %785 = vmatprep.subr.bf16.mxu0 0
        %786 = vmatpush2.bf16.msra.mxu0 0
        %787 = vmatprep.subr.bf16.mxu0 0
        %788 = vmatpush2.bf16.msra.mxu0 0
        %789 = vmatprep.subr.bf16.mxu0 0
        %790 = vmatpush2.bf16.msra.mxu0 0
        %791 = vmatprep.subr.bf16.mxu0 0
        %792 = vmatpush2.bf16.msra.mxu0 0
        %793 = vmatprep.subr.bf16.mxu0 0
        %794 = vmatpush2.bf16.msra.mxu0 0
        %795 = vmatprep.subr.bf16.mxu0 0
        %796 = vmatpush2.bf16.msra.mxu0 0
        %797 = vmatprep.subr.bf16.mxu0 0
        %798 = vmatpush2.bf16.msra.mxu0 0
        %799 = vmatprep.subr.bf16.mxu0 0
        %800 = vmatpush2.bf16.msra.mxu0 0
        %801 = vmatprep.mubr.bf16.mxu0 0
        %802 = vmatmul.mubr.bf16.gmra.mxu0 %v697
        %v803 = vpop.f32.mrf.mxu0
        %v804 = vadd.f32 0.0, %v803
        %v805 = vpop.f32.mrf.mxu0
        %v806 = vpop.f32.mrf.mxu0
        %v807 = vadd.f32 0.0, %v806
        %v808 = vpop.f32.mrf.mxu0
        %809 = vmatprep.mubr.bf16.mxu0 0
        %810 = vmatmul.mubr.bf16.gmra.mxu0 %v698
        %v811 = vpop.f32.mrf.mxu0
        %v812 = vadd.f32 0.0, %v811
        %v813 = vpop.f32.mrf.mxu0
        %v814 = vpop.f32.mrf.mxu0
        %v815 = vadd.f32 0.0, %v814
        %v816 = vpop.f32.mrf.mxu0
        %817 = vmatprep.mubr.bf16.mxu0 0
        %818 = vmatmul.mubr.bf16.gmra.mxu0 %v699
        %v819 = vpop.f32.mrf.mxu0
        %v820 = vadd.f32 0.0, %v819
        %v821 = vpop.f32.mrf.mxu0
        %v822 = vpop.f32.mrf.mxu0
        %v823 = vadd.f32 0.0, %v822
        %v824 = vpop.f32.mrf.mxu0
        %825 = vmatprep.mubr.bf16.mxu0 0
        %826 = vmatmul.mubr.bf16.gmra.mxu0 %v700
        %v827 = vpop.f32.mrf.mxu0
        %v828 = vadd.f32 0.0, %v827
        %v829 = vpop.f32.mrf.mxu0
        %v830 = vpop.f32.mrf.mxu0
        %v831 = vadd.f32 0.0, %v830
        %v832 = vpop.f32.mrf.mxu0
        %833 = vmatprep.mubr.bf16.mxu0 0
        %834 = vmatmul.mubr.bf16.gmra.mxu0 %v701
        %v835 = vpop.f32.mrf.mxu0
        %v836 = vadd.f32 0.0, %v835
        %v837 = vpop.f32.mrf.mxu0
        %v838 = vpop.f32.mrf.mxu0
        %v839 = vadd.f32 0.0, %v838
        %v840 = vpop.f32.mrf.mxu0
        %841 = vmatprep.mubr.bf16.mxu0 0
        %842 = vmatmul.mubr.bf16.gmra.mxu0 %v702
        %v843 = vpop.f32.mrf.mxu0
        %v844 = vadd.f32 0.0, %v843
        %v845 = vpop.f32.mrf.mxu0
        %v846 = vpop.f32.mrf.mxu0
        %v847 = vadd.f32 0.0, %v846
        %v848 = vpop.f32.mrf.mxu0
        %849 = vmatprep.mubr.bf16.mxu0 0
        %850 = vmatmul.mubr.bf16.gmra.mxu0 %v703
        %v851 = vpop.f32.mrf.mxu0
        %v852 = vadd.f32 0.0, %v851
        %v853 = vpop.f32.mrf.mxu0
        %v854 = vpop.f32.mrf.mxu0
        %v855 = vadd.f32 0.0, %v854
        %v856 = vpop.f32.mrf.mxu0
        %857 = vmatprep.mubr.bf16.mxu0 0
        %858 = vmatmul.mubr.bf16.gmra.mxu0 %v704
        %v859 = vpop.f32.mrf.mxu0
        %v860 = vadd.f32 0.0, %v859
        %v861 = vpop.f32.mrf.mxu0
        %v862 = vpop.f32.mrf.mxu0
        %v863 = vadd.f32 0.0, %v862
        %v864 = vpop.f32.mrf.mxu0
        %865 = vdwg.mxu0
        %v866 = vadd.f32 %v681, %v804
        %v867 = vadd.f32 %v682, %v807
        %v868 = vadd.f32 %v683, %v812
        %v869 = vadd.f32 %v684, %v815
        %v870 = vadd.f32 %v685, %v820
        %v871 = vadd.f32 %v686, %v823
        %v872 = vadd.f32 %v687, %v828
        %v873 = vadd.f32 %v688, %v831
        %v874 = vadd.f32 %v689, %v836
        %v875 = vadd.f32 %v690, %v839
        %v876 = vadd.f32 %v691, %v844
        %v877 = vadd.f32 %v692, %v847
        %v878 = vadd.f32 %v693, %v852
        %v879 = vadd.f32 %v694, %v855
        %v880 = vadd.f32 %v695, %v860
        %v881 = vadd.f32 %v696, %v863
        %882 = vst [vmem:[#allocation2] sm:$0xff] %v866
        %883 = vst [vmem:[#allocation2 + $0x8] sm:$0xff] %v867
        %884 = vst [vmem:[#allocation2 + $0x10] sm:$0xff] %v868
        %885 = vst [vmem:[#allocation2 + $0x18] sm:$0xff] %v869
        %886 = vst [vmem:[#allocation2 + $0x20] sm:$0xff] %v870
        %887 = vst [vmem:[#allocation2 + $0x28] sm:$0xff] %v871
        %888 = vst [vmem:[#allocation2 + $0x30] sm:$0xff] %v872
        %889 = vst [vmem:[#allocation2 + $0x38] sm:$0xff] %v873
        %890 = vst [vmem:[#allocation2 + $0x40] sm:$0xff] %v874
        %891 = vst [vmem:[#allocation2 + $0x48] sm:$0xff] %v875
        %892 = vst [vmem:[#allocation2 + $0x50] sm:$0xff] %v876
        %893 = vst [vmem:[#allocation2 + $0x58] sm:$0xff] %v877
        %894 = vst [vmem:[#allocation2 + $0x60] sm:$0xff] %v878
        %895 = vst [vmem:[#allocation2 + $0x68] sm:$0xff] %v879
        %896 = vst [vmem:[#allocation2 + $0x70] sm:$0xff] %v880
        %897 = vst [vmem:[#allocation2 + $0x78] sm:$0xff] %v881
        %p898 = scmp.eq.s32.totalorder %s30, 1
        // Predicated region
        $region57: #{tpu_custom_call.1} parent=39 // pred_check
          %p899 = pneg %p898
        $region58: #{tpu_custom_call.1} parent=39 // pred_check_branch
          %901 = sbr.rel (%p899) target = $region60
        $region59: #{tpu_custom_call.1} parent=39 // pred_region
          %v902 = vld [vmem:[#allocation2] sm:$0xff]
          %v903 = vld [vmem:[#allocation2 + $0x8] sm:$0xff]
          %v904 = vld [vmem:[#allocation2 + $0x10] sm:$0xff]
          %v905 = vld [vmem:[#allocation2 + $0x18] sm:$0xff]
          %v906 = vld [vmem:[#allocation2 + $0x20] sm:$0xff]
          %v907 = vld [vmem:[#allocation2 + $0x28] sm:$0xff]
          %v908 = vld [vmem:[#allocation2 + $0x30] sm:$0xff]
          %v909 = vld [vmem:[#allocation2 + $0x38] sm:$0xff]
          %v910 = vld [vmem:[#allocation2 + $0x40] sm:$0xff]
          %v911 = vld [vmem:[#allocation2 + $0x48] sm:$0xff]
          %v912 = vld [vmem:[#allocation2 + $0x50] sm:$0xff]
          %v913 = vld [vmem:[#allocation2 + $0x58] sm:$0xff]
          %v914 = vld [vmem:[#allocation2 + $0x60] sm:$0xff]
          %v915 = vld [vmem:[#allocation2 + $0x68] sm:$0xff]
          %v916 = vld [vmem:[#allocation2 + $0x70] sm:$0xff]
          %v917 = vld [vmem:[#allocation2 + $0x78] sm:$0xff]
          %v918 = vld [vmem:[%s4] sm:$0x1]
          %v920 = vlaneseq
          %v921 = vshrl.u32 %v920, 7
          %v922 = vsub.s32 0, %v921
          %v923 = vrot.slane %v918, %v922
          %v925 = vadd.f32 %v902, %v923
          %v926 = vadd.f32 %v903, %v923
          %v927 = vadd.f32 %v904, %v923
          %v928 = vadd.f32 %v905, %v923
          %v929 = vadd.f32 %v906, %v923
          %v930 = vadd.f32 %v907, %v923
          %v931 = vadd.f32 %v908, %v923
          %v932 = vadd.f32 %v909, %v923
          %v933 = vadd.f32 %v910, %v923
          %v934 = vadd.f32 %v911, %v923
          %v935 = vadd.f32 %v912, %v923
          %v936 = vadd.f32 %v913, %v923
          %v937 = vadd.f32 %v914, %v923
          %v938 = vadd.f32 %v915, %v923
          %v939 = vadd.f32 %v916, %v923
          %v940 = vadd.f32 %v917, %v923
          %941 = vst [vmem:[%s341] sm:$0xff] %v925
          %942 = vst [vmem:[%s341 + $0x8] sm:$0xff] %v926
          %943 = vst [vmem:[%s341 + $0x10] sm:$0xff] %v927
          %944 = vst [vmem:[%s341 + $0x18] sm:$0xff] %v928
          %945 = vst [vmem:[%s341 + $0x20] sm:$0xff] %v929
          %946 = vst [vmem:[%s341 + $0x28] sm:$0xff] %v930
          %947 = vst [vmem:[%s341 + $0x30] sm:$0xff] %v931
          %948 = vst [vmem:[%s341 + $0x38] sm:$0xff] %v932
          %949 = vst [vmem:[%s341 + $0x40] sm:$0xff] %v933
          %950 = vst [vmem:[%s341 + $0x48] sm:$0xff] %v934
          %951 = vst [vmem:[%s341 + $0x50] sm:$0xff] %v935
          %952 = vst [vmem:[%s341 + $0x58] sm:$0xff] %v936
          %953 = vst [vmem:[%s341 + $0x60] sm:$0xff] %v937
          %954 = vst [vmem:[%s341 + $0x68] sm:$0xff] %v938
          %955 = vst [vmem:[%s341 + $0x70] sm:$0xff] %v939
          %956 = vst [vmem:[%s341 + $0x78] sm:$0xff] %v940
        $region60: #{tpu_custom_call.1} parent=39 // pred_fallthru
          _
        %s957 = sand.u32 %s170, 1
        %s958 = scalar_lea.sflag [#allocation5], %s957
        %s959 = sand.u32 %s170, 1
        %s960 = smul.addr %s959, 128
        %s961 = scalar_lea.vmem [#allocation9], %s960
        // Predicated region
        $region61: #{tpu_custom_call.1} parent=39 // pred_check
          %p962 = pneg %p180
        $region62: #{tpu_custom_call.1} parent=39 // pred_check_branch
          %964 = sbr.rel (%p962) target = $region64
        $region63: #{tpu_custom_call.1} parent=39 // pred_region
          %s965 = smul.u32 16, %s29
          %s967 = ssub.s32 2048, 2048
          %968 = vsyncadd %s958, %s967
          %s969 = smul.addr %s965, 128
          %s970 = scalar_lea.hbm %s5, %s969
          %s971 = sshll.u32 %s961, 4
          %s972 = int_to_ptr.vmem [resolvable:$true] %s971
          %977 = dma.vmem_to_hbm [thread:$0]  %s972, 2048, %s970, %s958, 128, 128, 8
        $region64: #{tpu_custom_call.1} parent=39 // pred_fallthru
          _
      $region40: #{tpu_custom_call.1} parent=5 // pred_fallthru
        _
      %p978 = scmp.le.s32.totalorder 2, %s20
      // Predicated region
      $region65: #{tpu_custom_call.1} parent=5 // pred_check
        %p979 = pneg %p978
      $region66: #{tpu_custom_call.1} parent=5 // pred_check_branch
        %981 = sbr.rel (%p979) target = $region68
      $region67: #{tpu_custom_call.1} parent=5 // pred_region
        %s982 = ssub.s32 %s20, 2
        // Predicated region
        $region69: #{tpu_custom_call.1} parent=67 // pred_check
          %p983 = pneg %p186
        $region70: #{tpu_custom_call.1} parent=67 // pred_check_branch
          %985 = sbr.rel (%p983) target = $region72
        $region71: #{tpu_custom_call.1} parent=67 // pred_region
          %s986 = sand.u32 %s171, 1
          %s987 = scalar_lea.sflag [#allocation5], %s986
          %s988 = sand.u32 %s171, 1
          %s989 = smul.addr %s988, 128
          %s990 = scalar_lea.vmem [#allocation9], %s989
          %991 = dma.done %s987, 2048
        $region72: #{tpu_custom_call.1} parent=67 // pred_fallthru
          _
      $region68: #{tpu_custom_call.1} parent=5 // pred_fallthru
        _
    $region6: #{tpu_custom_call.1} parent=1 // loop_footer
      %s24 = sadd.s32 1, %s20
    $region7: #{tpu_custom_call.1} parent=1 // loop_footer_branch
      %19 = sbr.rel target = $region3
    $region8: #{tpu_custom_call.1} parent=1 // loop_exit
      _
    %992 = vsyncpa [#allocation4], 1
    %s993 = scalar_lea.sflag [#allocation4], 1
    %994 = vsyncpa %s993, 1
    %995 = vsyncpa [#allocation7], 1
    %s996 = scalar_lea.sflag [#allocation7], 1
    %997 = vsyncpa %s996, 1
    %998 = vsyncpa [#allocation5], 1
    %s999 = scalar_lea.sflag [#allocation5], 1
    %1000 = vsyncpa %s999, 1

</llo_original>
